<compile_context>
chip_gen: v7x
topology: tpu7x:2x2x1
jax: 0.10.0
libtpu: 0.0.40
codegen_flags: <defaults>
</compile_context>

<pallas_src>
import jax
import jax.numpy as jnp
from jax.experimental import pallas as pl
from jax.experimental.pallas import tpu as pltpu


def _round_up(n, m):
    return ((n + m - 1) // m) * m


def _sublane_rows(dtype):
    """Minimum sublane (row) alignment: 8 for 32-bit, 16 for bf16, 32 for int8/fp8."""
    return max(8, 32 // jnp.dtype(dtype).itemsize)


# ----------------------------------------------------------------------------
# Path 1: generic ResidualAdd — Pallas kernel for the `x += res` accumulation.
# ----------------------------------------------------------------------------
def _residual_add_kernel(y_ref, x_ref, o_ref):
    # out = fn(x) + x   (the in-place `x += res` of ResidualAdd)
    o_ref[...] = y_ref[...] + x_ref[...]


def _pallas_residual_add(y, x, *, target_block_bytes=2 * 1024 * 1024):
    """Elementwise y + x for arbitrary shapes, HBM-bandwidth-roofline tiled."""
    assert y.shape == x.shape and y.dtype == x.dtype
    shape, dtype = y.shape, y.dtype
    n = y.size
    if n == 0:
        return y
    itemsize = jnp.dtype(dtype).itemsize
    align = _sublane_rows(dtype)

    # Choose a 2-D view without ever materializing a padded copy of the tensor.
    last = shape[-1] if len(shape) else 1
    if len(shape) >= 2 and last % 128 == 0 and last * itemsize * align <= target_block_bytes:
        M, L = n // last, last            # natural lane-dense (M, last_dim) view
    elif n % 128 == 0:
        L = 128                           # flatten to a lane-dense slab
        for cand in (1024, 512, 256):
            if n % cand == 0 and cand * itemsize * align <= target_block_bytes:
                L = cand
                break
        M = n // L
    else:
        # Ragged trailing dim: keep it as a full-extent block dim (legal even if
        # not a multiple of 128).  Lane stores are masked, but we avoid the
        # whole-tensor jnp.pad read+write round trip through HBM.
        M, L = (n // last, last) if len(shape) >= 2 else (1, n)

    y2 = y.reshape(M, L)
    x2 = x.reshape(M, L)

    # Block rows: ~target_block_bytes per operand, sublane-aligned; a partial
    # boundary block (grid = cdiv) is handled by Pallas via masked stores.
    max_rows = max(align, (target_block_bytes // (L * itemsize)) // align * align)
    if M <= max_rows:
        br, grid = M, 1                   # single full-extent block
    else:
        br, grid = max_rows, pl.cdiv(M, max_rows)

    block_bytes = br * L * itemsize
    # 3 operands x 2 pipeline buffers x block, with 2x headroom; capped at
    # 32 MiB so it stays within v7x's 64 MiB physical VMEM and raises v5e's
    # 16 MiB scoped default only when actually needed.
    vmem_limit = int(min(32 * 1024 * 1024,
                         max(16 * 1024 * 1024, 2 * 3 * 2 * block_bytes)))

    out = pl.pallas_call(
        _residual_add_kernel,
        out_shape=jax.ShapeDtypeStruct((M, L), dtype),
        grid_spec=pltpu.PrefetchScalarGridSpec(
            num_scalar_prefetch=0,
            grid=(grid,),
            in_specs=[
                pl.BlockSpec((br, L), lambda i: (i, 0)),   # y = fn(x)
                pl.BlockSpec((br, L), lambda i: (i, 0)),   # residual x
            ],
            out_specs=pl.BlockSpec((br, L), lambda i: (i, 0)),
        ),
        compiler_params=pltpu.CompilerParams(
            dimension_semantics=("parallel",),
            vmem_limit_bytes=vmem_limit,
        ),
        cost_estimate=pl.CostEstimate(
            flops=n, transcendentals=0, bytes_accessed=3 * n * itemsize),
        # Reuse fn(x)'s HBM buffer for the output, like the in-place `x += res`.
        input_output_aliases={0: 0},
    )(y2, x2)

    return out.reshape(shape)


def make_residual_add(fn, *, target_block_bytes=2 * 1024 * 1024):
    """Build a jitted forward for ResidualAdd(fn): out = fn(x) + x.

    NOTE: when `fn` is an XLA-evaluated callable, XLA could fuse `fn(x) + x`
    into fn's epilogue and avoid re-reading fn's output from HBM.  This Pallas
    path is the right tool when fn(x) is already materialized in HBM (e.g. the
    output of another Pallas kernel) or when explicit tiling control is wanted.
    """

    @jax.jit
    def forward(x):
        # TODO(synk): an arbitrary nn.Module `fn` has no generic Pallas
        # equivalent; it is evaluated by XLA, only `x += res` is the kernel.
        y = fn(x)
        return _pallas_residual_add(y, x, target_block_bytes=target_block_bytes)

    return forward


# ----------------------------------------------------------------------------
# Path 2: fused ResidualAdd(FeedForward) — fn + residual add in one kernel.
# (This is how ResidualAdd is used inside Baseline_Model's encoder blocks.)
# ----------------------------------------------------------------------------
FFN_BLOCK_TOKENS = 256  # >=256 fills the 256-wide MXU M dim on v6e/v7x and
                        # amortizes the ~0.35 us/grid-step overhead.


def _residual_ffn_kernel(x_ref, w1_ref, b1_ref, w2_ref, b2_ref, o_ref):
    """out = x + Linear2(GELU(Linear1(x)))   for one (TM, E) token tile.

    Matmuls run on the MXU with bf16 operands / f32 accumulation; bias adds,
    GELU and the residual add stay in f32 on the VPU (portable to v5e, which
    has no bf16 VPU/EUP path).
    """
    x = x_ref[...]                                                    # (TM, E) f32
    h = jnp.dot(x.astype(jnp.bfloat16), w1_ref[...],
                preferred_element_type=jnp.float32) + b1_ref[...]     # (TM, H)
    # tanh-approx GELU; PyTorch nn.GELU() defaults to the exact erf form.
    h = jax.nn.gelu(h, approximate=True)
    y = jnp.dot(h.astype(jnp.bfloat16), w2_ref[...],
                preferred_element_type=jnp.float32) + b2_ref[...]     # (TM, E)
    o_ref[...] = (y + x).astype(o_ref.dtype)                          # x += res


@jax.jit
def residual_ffn_forward(x, params):
    """x: (B, S, E) f32 -> (B, S, E) f32, ResidualAdd around a GELU MLP."""
    B, S, E = x.shape
    H = params["w1"].shape[1]
    M = B * S

    tm = FFN_BLOCK_TOKENS if M >= FFN_BLOCK_TOKENS else M
    m_pad = _round_up(M, tm)
    xm = x.reshape(M, E)
    if m_pad != M:
        xm = jnp.pad(xm, ((0, m_pad - M), (0, 0)))

    w1 = params["w1"].astype(jnp.bfloat16)        # MXU operands in bf16
    w2 = params["w2"].astype(jnp.bfloat16)
    b1 = params["b1"].reshape(1, H).astype(jnp.float32)
    b2 = params["b2"].reshape(1, E).astype(jnp.float32)

    # TODO(synk): for large models (E=768, H>=3072) on v7x (64 MiB VMEM), tile
    # the H axis with an f32 accumulator scratch (pl.when init/finalize)
    # instead of keeping W1/W2 fully resident, and pick E/H as multiples of 256.
    bytes_accessed = (2 * m_pad * E * 4) + (E * H + H * E) * 2 + (H + E) * 4
    out = pl.pallas_call(
        _residual_ffn_kernel,
        out_shape=jax.ShapeDtypeStruct((m_pad, E), x.dtype),
        grid_spec=pltpu.PrefetchScalarGridSpec(
            num_scalar_prefetch=0,
            grid=(m_pad // tm,),
            in_specs=[
                pl.BlockSpec((tm, E), lambda i: (i, 0)),    # token tile
                pl.BlockSpec((E, H), lambda i: (0, 0)),     # W1 (resident)
                pl.BlockSpec((1, H), lambda i: (0, 0)),     # b1
                pl.BlockSpec((H, E), lambda i: (0, 0)),     # W2 (resident)
                pl.BlockSpec((1, E), lambda i: (0, 0)),     # b2
            ],
            out_specs=pl.BlockSpec((tm, E), lambda i: (i, 0)),
        ),
        compiler_params=pltpu.CompilerParams(dimension_semantics=("parallel",)),
        cost_estimate=pl.CostEstimate(
            flops=4 * m_pad * E * H,
            transcendentals=m_pad * H,
            bytes_accessed=bytes_accessed),
        # Mirror the in-place `x += res` (only saves a buffer when the operand
        # is donatable/an intermediate; harmless otherwise).
        input_output_aliases={0: 0},
    )(xm, w1, b1, w2, b2)

    return out[:M].reshape(B, S, E)


def _ffn_reference(x, params):
    """Pure-JAX reference with the same bf16-operand / f32-accum matmul math."""
    B, S, E = x.shape
    xm = x.reshape(-1, E)
    h = jnp.dot(xm.astype(jnp.bfloat16), params["w1"].astype(jnp.bfloat16),
                preferred_element_type=jnp.float32) + params["b1"]
    h = jax.nn.gelu(h, approximate=True)
    y = jnp.dot(h.astype(jnp.bfloat16), params["w2"].astype(jnp.bfloat16),
                preferred_element_type=jnp.float32) + params["b2"]
    return x + y.reshape(B, S, E)


if __name__ == "__main__":
    key = jax.random.PRNGKey(0)
    ks = jax.random.split(key, 10)

    # --- generic ResidualAdd around an arbitrary (XLA-evaluated) fn ----------
    B, S, E = 2, 8, 32
    x = jax.random.normal(ks[0], (B, S, E), jnp.float32)
    w = 0.1 * jax.random.normal(ks[1], (E, E), jnp.float32)

    def token_mix(t):                        # stand-in for an arbitrary module
        return jnp.tanh(t @ w)

    fwd = make_residual_add(token_mix)
    out = jax.block_until_ready(fwd(x))
    ref = token_mix(x) + x
    assert out.shape == x.shape, out.shape
    assert jnp.allclose(out, ref, atol=1e-3, rtol=1e-3), \
        float(jnp.max(jnp.abs(out - ref)))

    # Lane-dense multi-step grid with a masked boundary block (600 rows, 256/block).
    x2 = jax.random.normal(ks[2], (2, 300, 128), jnp.float32)
    fwd2 = make_residual_add(jnp.sin, target_block_bytes=128 * 1024)
    out2 = jax.block_until_ready(fwd2(x2))
    ref2 = jnp.sin(x2) + x2
    assert out2.shape == x2.shape, out2.shape
    assert jnp.allclose(out2, ref2, atol=1e-5, rtol=1e-5), \
        float(jnp.max(jnp.abs(out2 - ref2)))

    # Ragged trailing dim: no whole-tensor pad, full-extent (masked-lane) block.
    x3 = jax.random.normal(ks[3], (4, 100, 100), jnp.float32)
    fwd3 = make_residual_add(lambda t: 0.5 * t + 1.0)
    out3 = jax.block_until_ready(fwd3(x3))
    ref3 = (0.5 * x3 + 1.0) + x3
    assert out3.shape == x3.shape, out3.shape
    assert jnp.allclose(out3, ref3, atol=1e-5, rtol=1e-5), \
        float(jnp.max(jnp.abs(out3 - ref3)))

    # --- fused ResidualAdd(FeedForward): fn computed inside the kernel -------
    B4, S4, E4, H4 = 2, 256, 128, 256        # M=512 tokens -> 2 even grid steps
    x4 = jax.random.normal(ks[4], (B4, S4, E4), jnp.float32)
    params = {
        "w1": 0.1 * jax.random.normal(ks[5], (E4, H4), jnp.float32),
        "b1": 0.1 * jax.random.normal(ks[6], (H4,), jnp.float32),
        "w2": 0.1 * jax.random.normal(ks[7], (H4, E4), jnp.float32),
        "b2": 0.1 * jax.random.normal(ks[8], (E4,), jnp.float32),
    }
    out4 = jax.block_until_ready(residual_ffn_forward(x4, params))
    ref4 = _ffn_reference(x4, params)
    assert out4.shape == x4.shape, out4.shape
    assert jnp.allclose(out4, ref4, atol=2e-3, rtol=2e-3), \
        float(jnp.max(jnp.abs(out4 - ref4)))

    print("KERNEL_OK")
</pallas_src>

<mosaic_0001>
module attributes {stable_mosaic.version = 11 : i64} {
  func.func @_residual_add_kernel(%arg0: i32, %arg1: memref<1x512xf32, #tpu.memory_space<vmem>>, %arg2: memref<1x512xf32, #tpu.memory_space<vmem>>, %arg3: memref<1x512xf32, #tpu.memory_space<vmem>>) attributes {dimension_semantics = [#tpu.dimension_semantics<parallel>], iteration_bounds = array<i64: 1>, scalar_prefetch = 0 : i64, scratch_operands = 0 : i64, tpu.core_type = #tpu.core_type<tc>, window_params = [{transform_indices = @transform_0, window_bounds = array<i64: 1, 512>}, {transform_indices = @transform_1, window_bounds = array<i64: 1, 512>}, {transform_indices = @transform_2, window_bounds = array<i64: 1, 512>}]} {
    %c0 = arith.constant 0 : index
    %c0_0 = arith.constant 0 : index
    %0 = vector.load %arg1[%c0, %c0_0] : memref<1x512xf32, #tpu.memory_space<vmem>>, vector<1x512xf32>
    %c0_1 = arith.constant 0 : index
    %c0_2 = arith.constant 0 : index
    %1 = vector.load %arg2[%c0_1, %c0_2] : memref<1x512xf32, #tpu.memory_space<vmem>>, vector<1x512xf32>
    %2 = arith.addf %0, %1 : vector<1x512xf32>
    %c0_3 = arith.constant 0 : index
    %c0_4 = arith.constant 0 : index
    %3 = vector.load %arg3[%c0_3, %c0_4] : memref<1x512xf32, #tpu.memory_space<vmem>>, vector<1x512xf32>
    tpu.vector_store %arg3[%c0_3, %c0_4], %2 {strides = array<i32>} : memref<1x512xf32, #tpu.memory_space<vmem>>, vector<1x512xf32>,
    return
  }
  func.func @transform_0(%arg0: i32) -> (i32, i32) {
    %c0_i32 = arith.constant 0 : i32
    %c0_i32_0 = arith.constant 0 : i32
    return %arg0, %c0_i32 : i32, i32
  }
  func.func @transform_1(%arg0: i32) -> (i32, i32) {
    %c0_i32 = arith.constant 0 : i32
    %c0_i32_0 = arith.constant 0 : i32
    return %arg0, %c0_i32 : i32, i32
  }
  func.func @transform_2(%arg0: i32) -> (i32, i32) {
    %c0_i32 = arith.constant 0 : i32
    %c0_i32_0 = arith.constant 0 : i32
    return %arg0, %c0_i32 : i32, i32
  }
}

</mosaic_0001>

<llo_original>
// kernel: forward.1
$region0: #{forward.1}
  #allocation0 [shape = 'u32[]', space=smem, size = 0x4, offset = 0x4, fixed_abs, tag = 'smem constant byte address 0x4 - core index']
  #allocation1 [shape = 'u32[144,128]{1,0:T(1,128)}', space=vmem, size = 0x12000, scoped, tag = 'internal scratch']
  %s0 = inlined_call_operand.vmem [shape: f32[1,512], index: 0, kind: input, shape index: {}, may-alias: {0,2}]
  %s1 = inlined_call_operand.vmem [shape: f32[1,512], index: 1, kind: input, shape index: {}]
  %s2 = inlined_call_operand.vmem [shape: f32[1,512], index: 2, kind: output, shape index: {}, may-alias: {0,2}]
  %s3 = sld [smem:[#allocation0]]
  $region18: #{forward.1} parent=0
    _
  %s5 = ssub.s32 1, %s3
  %s6 = scalar_select 0, %s5, %s3
  // Predicated region
  $region2: #{forward.1} parent=0 // pred_check
    _
  $region3: #{forward.1} parent=0 // pred_check_branch
    %8 = sbr.rel (0) target = $region5
  $region4: #{forward.1} parent=0 // pred_region
    _
  $region5: #{forward.1} parent=0 // pred_fallthru
    _
  // Predicated region
  $region6: #{forward.1} parent=0 // pred_check
    _
  $region7: #{forward.1} parent=0 // pred_check_branch
    %10 = sbr.rel (0) target = $region9
  $region8: #{forward.1} parent=0 // pred_region
    _
  $region9: #{forward.1} parent=0 // pred_fallthru
    _
  %v11 = vld [vmem:[%s0] sm:$0xf]
  %v12 = vld [vmem:[%s1] sm:$0xf]
  %v13 = vadd.f32 %v11, %v12
  %v14 = vlaneseq
  %vm15 = vcmp.ge.s32.totalorder %v14, 0
  %vm16 = vcmp.lt.s32.totalorder %v14, 512
  %vm17 = vmand %vm15, %vm16
  %18 = vst.msk [vmem:[%s2] sm:$0xf] %vm17, %v13
  // Predicated region
  $region10: #{forward.1} parent=0 // pred_check
    _
  $region11: #{forward.1} parent=0 // pred_check_branch
    %20 = sbr.rel (0) target = $region13
  $region12: #{forward.1} parent=0 // pred_region
    _
  $region13: #{forward.1} parent=0 // pred_fallthru
    _
  // Predicated region
  $region14: #{forward.1} parent=0 // pred_check
    _
  $region15: #{forward.1} parent=0 // pred_check_branch
    %22 = sbr.rel (0) target = $region17
  $region16: #{forward.1} parent=0 // pred_region
    _
  $region17: #{forward.1} parent=0 // pred_fallthru
    _

</llo_original>
